<compile_context>
chip_gen: v6e
topology: v6e:2x2x1
jax: 0.10.0
libtpu: 0.0.40
codegen_flags: <defaults>
</compile_context>

<pallas_src>
import functools

import jax
import jax.numpy as jnp
from jax.experimental import pallas as pl
from jax.experimental.pallas import tpu as pltpu

LANES = 128
SUBLANES = 8
MAX_TILE_ROWS = 2048  # (2048, 128) f32 tile = 1 MiB per pipeline buffer


def _bce_partial_kernel(x_ref, t_ref, o_ref, *, tile_rows, total_elems,
                        need_mask):
    """One tile of stable BCE-with-logits; writes an (8, 128) partial sum."""
    x = x_ref[...].astype(jnp.float32)
    t = t_ref[...].astype(jnp.float32)

    # -x*t + max(-x,0) + log(exp(-max)+exp(-x-max)) == -x*t + max(-x,0) + log1p(exp(-|x|))
    loss = -x * t + jnp.maximum(-x, 0.0) + jnp.log(1.0 + jnp.exp(-jnp.abs(x)))

    if need_mask:  # static: only emitted when there is a padded / partial tail
        i = pl.program_id(0)
        row = jax.lax.broadcasted_iota(jnp.int32, (tile_rows, LANES), 0)
        lane = jax.lax.broadcasted_iota(jnp.int32, (tile_rows, LANES), 1)
        flat = (i * tile_rows + row) * LANES + lane
        loss = jnp.where(flat < total_elems, loss, 0.0)

    # Keep the reduction vectorized: regroup sublane rows into (8,128) vregs
    # (layout-trivial reshape) and add them on the VPU. Final tiny reduction
    # over (n_tiles, 8, 128) happens in plain JAX outside the kernel.
    partial = jnp.sum(loss.reshape(tile_rows // SUBLANES, SUBLANES, LANES),
                      axis=0)
    o_ref[...] = partial.reshape(1, SUBLANES, LANES)


@functools.partial(jax.jit, static_argnames=("size_average",))
def bce_logits_loss_with_mask(logits, target_heatmap, mask=None, *,
                              size_average=True):
    """logits, target_heatmap: (N, C, H, W) float arrays.

    `mask` is accepted for API fidelity but — like the reference module's
    forward — never applied.
    """
    del mask
    N, C, H, W = logits.shape
    total = N * C * H * W

    chunk = SUBLANES * LANES  # 1024
    padded_total = ((total + chunk - 1) // chunk) * chunk
    rows = padded_total // LANES              # multiple of 8
    tile_rows = min(MAX_TILE_ROWS, rows)      # multiple of 8
    n_tiles = (rows + tile_rows - 1) // tile_rows
    need_mask = (padded_total != total) or (rows % tile_rows != 0)

    def as2d(a):
        flat = a.reshape(-1)
        if padded_total != total:
            flat = jnp.pad(flat, (0, padded_total - total))
        return flat.reshape(rows, LANES)

    x2d = as2d(logits)
    t2d = as2d(target_heatmap)

    in_spec = pl.BlockSpec((tile_rows, LANES), lambda i: (i, 0))
    out_spec = pl.BlockSpec((1, SUBLANES, LANES), lambda i: (i, 0, 0))

    partials = pl.pallas_call(
        functools.partial(_bce_partial_kernel, tile_rows=tile_rows,
                          total_elems=total, need_mask=need_mask),
        out_shape=jax.ShapeDtypeStruct((n_tiles, SUBLANES, LANES),
                                       jnp.float32),
        grid_spec=pltpu.PrefetchScalarGridSpec(
            num_scalar_prefetch=0,
            grid=(n_tiles,),
            in_specs=[in_spec, in_spec],
            out_specs=out_spec,
        ),
        compiler_params=pltpu.CompilerParams(
            dimension_semantics=("parallel",)),
    )(x2d, t2d)

    total_sum = jnp.sum(partials)
    if size_average:
        return total_sum / jnp.float32(H * W)
    return total_sum


def produce_target_heatmap(coords, H, W):
    """coords: (N, C, 2) int (y, x) -> one-hot heatmap (N, C, H, W) float32."""
    N, C, _ = coords.shape
    ys = coords[..., 0].astype(jnp.int32)  # (N, C)
    xs = coords[..., 1].astype(jnp.int32)
    yy = jax.lax.broadcasted_iota(jnp.int32, (N, C, H, W), 2)
    xx = jax.lax.broadcasted_iota(jnp.int32, (N, C, H, W), 3)
    hm = ((yy == ys[:, :, None, None]) & (xx == xs[:, :, None, None]))
    return hm.astype(jnp.float32)


def _reference_loss(logits, target_heatmap, size_average=True):
    x = logits.astype(jnp.float32)
    t = target_heatmap.astype(jnp.float32)
    max_val = jnp.maximum(-x, 0.0)
    loss = -x * t + max_val + jnp.log(jnp.exp(-max_val) + jnp.exp(-x - max_val))
    s = jnp.sum(loss)
    if size_average:
        H, W = logits.shape[2], logits.shape[3]
        return s / (H * W)
    return s


if __name__ == "__main__":
    key = jax.random.PRNGKey(0)
    N, C, H, W = 2, 4, 16, 16

    k1, k2, k3 = jax.random.split(key, 3)
    logits = jax.random.normal(k1, (N, C, H, W), jnp.float32)
    coords = jnp.stack(
        [jax.random.randint(k2, (N, C), 0, H),
         jax.random.randint(k3, (N, C), 0, W)], axis=-1)  # (N, C, 2)

    target_heatmap = produce_target_heatmap(coords, H, W)

    out = bce_logits_loss_with_mask(logits, target_heatmap,
                                    size_average=True)
    out = jax.block_until_ready(out)

    ref = _reference_loss(logits, target_heatmap, size_average=True)
    assert jnp.allclose(out, ref, rtol=1e-5, atol=1e-5), (out, ref)

    print("KERNEL_OK")
</pallas_src>

<mosaic_0001>
module attributes {stable_mosaic.version = 11 : i64} {
  func.func @_bce_partial_kernel(%arg0: i32, %arg1: memref<16x128xf32, #tpu.memory_space<vmem>>, %arg2: memref<16x128xf32, #tpu.memory_space<vmem>>, %arg3: memref<1x8x128xf32, #tpu.memory_space<vmem>>) attributes {dimension_semantics = [#tpu.dimension_semantics<parallel>], iteration_bounds = array<i64: 1>, scalar_prefetch = 0 : i64, scratch_operands = 0 : i64, tpu.core_type = #tpu.core_type<tc>, window_params = [{transform_indices = @transform_0, window_bounds = array<i64: 16, 128>}, {transform_indices = @transform_1, window_bounds = array<i64: 16, 128>}, {transform_indices = @transform_2, window_bounds = array<i64: 1, 8, 128>}]} {
    %c0 = arith.constant 0 : index
    %c0_0 = arith.constant 0 : index
    %0 = vector.load %arg1[%c0, %c0_0] : memref<16x128xf32, #tpu.memory_space<vmem>>, vector<16x128xf32>
    %c0_1 = arith.constant 0 : index
    %c0_2 = arith.constant 0 : index
    %1 = vector.load %arg2[%c0_1, %c0_2] : memref<16x128xf32, #tpu.memory_space<vmem>>, vector<16x128xf32>
    %cst = arith.constant 0.000000e+00 : f32
    %2 = vector.broadcast %cst : f32 to vector<16x128xf32>
    %3 = arith.subf %2, %0 : vector<16x128xf32>
    %4 = arith.mulf %3, %1 : vector<16x128xf32>
    %cst_3 = arith.constant 0.000000e+00 : f32
    %5 = vector.broadcast %cst_3 : f32 to vector<16x128xf32>
    %6 = arith.subf %5, %0 : vector<16x128xf32>
    %cst_4 = arith.constant 0.000000e+00 : f32
    %7 = vector.broadcast %cst_4 : f32 to vector<16x128xf32>
    %8 = arith.maximumf %6, %7 : vector<16x128xf32>
    %9 = arith.addf %4, %8 : vector<16x128xf32>
    %10 = math.absf %0 : vector<16x128xf32>
    %cst_5 = arith.constant 0.000000e+00 : f32
    %11 = vector.broadcast %cst_5 : f32 to vector<16x128xf32>
    %12 = arith.subf %11, %10 : vector<16x128xf32>
    %13 = math.exp %12 : vector<16x128xf32>
    %cst_6 = arith.constant 1.000000e+00 : f32
    %14 = vector.broadcast %cst_6 : f32 to vector<16x128xf32>
    %15 = arith.addf %14, %13 : vector<16x128xf32>
    %16 = math.log %15 : vector<16x128xf32>
    %17 = arith.addf %9, %16 : vector<16x128xf32>
    %18 = vector.shape_cast %17 : vector<16x128xf32> to vector<2x8x128xf32>
    %cst_7 = arith.constant dense<0.000000e+00> : vector<8x128xf32>
    %19 = vector.multi_reduction <add>, %18, %cst_7 [0] : vector<2x8x128xf32> to vector<8x128xf32>
    %20 = vector.shape_cast %19 : vector<8x128xf32> to vector<1x8x128xf32>
    %c0_8 = arith.constant 0 : index
    %c0_9 = arith.constant 0 : index
    %c0_10 = arith.constant 0 : index
    %21 = vector.load %arg3[%c0_8, %c0_9, %c0_10] : memref<1x8x128xf32, #tpu.memory_space<vmem>>, vector<1x8x128xf32>
    tpu.vector_store %arg3[%c0_8, %c0_9, %c0_10], %20 {strides = array<i32>} : memref<1x8x128xf32, #tpu.memory_space<vmem>>, vector<1x8x128xf32>,
    return
  }
  func.func @transform_0(%arg0: i32) -> (i32, i32) {
    %c0_i32 = arith.constant 0 : i32
    %c0_i32_0 = arith.constant 0 : i32
    return %arg0, %c0_i32 : i32, i32
  }
  func.func @transform_1(%arg0: i32) -> (i32, i32) {
    %c0_i32 = arith.constant 0 : i32
    %c0_i32_0 = arith.constant 0 : i32
    return %arg0, %c0_i32 : i32, i32
  }
  func.func @transform_2(%arg0: i32) -> (i32, i32, i32) {
    %c0_i32 = arith.constant 0 : i32
    %c0_i32_0 = arith.constant 0 : i32
    %c0_i32_1 = arith.constant 0 : i32
    return %arg0, %c0_i32, %c0_i32_0 : i32, i32, i32
  }
}

</mosaic_0001>

<llo_original>
// kernel: bce_logits_loss_with_mask.1
$region0: #{bce_logits_loss_with_mask.1}
  #allocation0 [shape = 'u32[]', space=smem, size = 0x4, offset = 0x4, fixed_abs, tag = 'smem constant byte address 0x4 - core index']
  #allocation1 [shape = 'u32[144,128]{1,0:T(1,128)}', space=vmem, size = 0x12000, scoped, tag = 'internal scratch']
  %s0 = inlined_call_operand.vmem [shape: f32[16,128], index: 0, kind: input, shape index: {}]
  %s1 = inlined_call_operand.vmem [shape: f32[16,128], index: 1, kind: input, shape index: {}]
  %s2 = inlined_call_operand.vmem [shape: f32[1,8,128], index: 2, kind: output, shape index: {}]
  %s3 = sld [smem:[#allocation0]]
  $region18: #{bce_logits_loss_with_mask.1} parent=0
    _
  %s5 = ssub.s32 1, %s3
  %s6 = scalar_select 0, %s5, %s3
  // Predicated region
  $region2: #{bce_logits_loss_with_mask.1} parent=0 // pred_check
    _
  $region3: #{bce_logits_loss_with_mask.1} parent=0 // pred_check_branch
    %8 = sbr.rel (0) target = $region5
  $region4: #{bce_logits_loss_with_mask.1} parent=0 // pred_region
    _
  $region5: #{bce_logits_loss_with_mask.1} parent=0 // pred_fallthru
    _
  // Predicated region
  $region6: #{bce_logits_loss_with_mask.1} parent=0 // pred_check
    _
  $region7: #{bce_logits_loss_with_mask.1} parent=0 // pred_check_branch
    %10 = sbr.rel (0) target = $region9
  $region8: #{bce_logits_loss_with_mask.1} parent=0 // pred_region
    _
  $region9: #{bce_logits_loss_with_mask.1} parent=0 // pred_fallthru
    _
  %v11 = vld [vmem:[%s0] sm:$0xff]
  %v12 = vld [vmem:[%s0 + $0x8] sm:$0xff]
  %v13 = vld [vmem:[%s1] sm:$0xff]
  %v14 = vld [vmem:[%s1 + $0x8] sm:$0xff]
  %v15 = vsub.f32 0.0, %v11
  %v16 = vsub.f32 0.0, %v12
  %v17 = vmul.f32 %v15, %v13
  %v18 = vmul.f32 %v16, %v14
  %v19 = vmax.f32 %v15, 0.0
  %v20 = vmax.f32 %v16, 0.0
  %v21 = vadd.f32 %v17, %v19
  %v22 = vadd.f32 %v18, %v20
  %v23 = vand.u32 2147483647, %v11
  %v24 = vand.u32 2147483647, %v12
  %v25 = vsub.f32 0.0, %v23
  %v26 = vsub.f32 0.0, %v24
  %v27 = vmul.f32 %v25, 1.442695
  %v28 = vpow.pop %v27
  %v29 = vmul.f32 %v26, 1.442695
  %v30 = vpow.pop %v29
  %v31 = vadd.f32 %v28, 1.0
  %v32 = vadd.f32 %v30, 1.0
  %v33 = vlog2.pop %v31
  %v34 = vmul.f32 %v33, 0.6931472
  %v35 = vlog2.pop %v32
  %v36 = vmul.f32 %v35, 0.6931472
  %v37 = vadd.f32 %v21, %v34
  %v38 = vadd.f32 %v22, %v36
  %v39 = vadd.f32 %v37, %v38
  %40 = vst [vmem:[%s2] sm:$0xff] %v39
  // Predicated region
  $region10: #{bce_logits_loss_with_mask.1} parent=0 // pred_check
    _
  $region11: #{bce_logits_loss_with_mask.1} parent=0 // pred_check_branch
    %42 = sbr.rel (0) target = $region13
  $region12: #{bce_logits_loss_with_mask.1} parent=0 // pred_region
    _
  $region13: #{bce_logits_loss_with_mask.1} parent=0 // pred_fallthru
    _
  // Predicated region
  $region14: #{bce_logits_loss_with_mask.1} parent=0 // pred_check
    _
  $region15: #{bce_logits_loss_with_mask.1} parent=0 // pred_check_branch
    %44 = sbr.rel (0) target = $region17
  $region16: #{bce_logits_loss_with_mask.1} parent=0 // pred_region
    _
  $region17: #{bce_logits_loss_with_mask.1} parent=0 // pred_fallthru
    _

</llo_original>
